<compile_context>
chip_gen: v7x
topology: tpu7x:2x2x1
jax: 0.10.0
libtpu: 0.0.40
codegen_flags: <defaults>
</compile_context>

<pallas_src>
from functools import partial

import jax
import jax.numpy as jnp
from jax.experimental import pallas as pl
from jax.experimental.pallas import tpu as pltpu


# ----------------------------------------------------------------------------
# In-kernel helper
# ----------------------------------------------------------------------------
def _roll_rows(x, r):
    """Static circular roll along axis 0 by r rows: out[i] = x[(i - r) % n]."""
    if r == 0:
        return x
    n = x.shape[0]
    return jnp.concatenate([x[n - r:], x[:n - r]], axis=0)


# ----------------------------------------------------------------------------
# Kernel 1: masked per-channel partial sums for GroupNorm (tiled over depth)
# ----------------------------------------------------------------------------
def gn_stats_kernel(x_ref, mask_ref, sum_ref, sq_ref):
    """x_ref: (HpWp, C) one depth slice in padded / HW-flattened layout.
    mask_ref: (HpWp, 1), 1.0 on interior positions, 0.0 on the padding ring.
    Accumulates per-channel sum / sum-of-squares across the depth grid axis."""
    d = pl.program_id(1)
    x = x_ref[...]
    m = mask_ref[...]
    xm = x * m
    ps = jnp.sum(xm, axis=0, keepdims=True)        # (1, C)
    pq = jnp.sum(xm * x, axis=0, keepdims=True)    # (1, C) (mask is 0/1)

    @pl.when(d == 0)
    def _():
        sum_ref[...] = jnp.zeros_like(sum_ref)
        sq_ref[...] = jnp.zeros_like(sq_ref)

    sum_ref[...] += ps.reshape(1, 1, -1)
    sq_ref[...] += pq.reshape(1, 1, -1)


# ----------------------------------------------------------------------------
# Kernel 2: fused GroupNorm-affine + SiLU + 3x3x3 conv (+ optional 1x1x1
#           shortcut and residual add) for one (sample, depth) output plane.
# ----------------------------------------------------------------------------
def _fused_conv_body(xm_ref, x0_ref, xp_ref, scale_ref, shift_ref, mask_ref,
                     w_ref, b_ref, o_ref, *, wp, shortcut_refs=None):
    """xm/x0/xp_ref: (HpWp, C) raw (pre-norm) input depth slices d-1, d, d+1 in
    the zero-padded, HW-flattened layout.  scale/shift_ref: (1, 1, C) per-sample
    GroupNorm affine.  w_ref: (27, C, Cout) bf16 taps.  o_ref: (HpWp, Cout)."""
    hpwp, _ = x0_ref.shape
    cout = o_ref.shape[-1]
    d = pl.program_id(1)
    nd = pl.num_programs(1)

    scale = scale_ref[0]                  # (1, C) f32
    shift = shift_ref[0]                  # (1, C) f32
    hw_mask = mask_ref[...]               # (HpWp, 1) f32
    # Depth-padding validity: slice d-1 is the zero-pad slice iff d == 0,
    # slice d+1 iff d == nd - 1.  Masking restores exact zero padding even
    # though norm-affine + SiLU of 0 (or of a stale ring value) is nonzero.
    v_prev = jnp.where(d > 0, 1.0, 0.0).astype(jnp.float32)
    v_next = jnp.where(d < nd - 1, 1.0, 0.0).astype(jnp.float32)
    cdt = w_ref.dtype

    def norm_silu(x_r, m):
        y = x_r[...] * scale + shift       # GroupNorm affine (f32, VPU)
        y = y * jax.nn.sigmoid(y)          # SiLU (EUP sigmoid)
        return (y * m).astype(cdt)         # zero padding ring, cast for MXU

    slabs = (norm_silu(xm_ref, hw_mask * v_prev),
             norm_silu(x0_ref, hw_mask),
             norm_silu(xp_ref, hw_mask * v_next))

    acc = jnp.zeros((hpwp, cout), jnp.float32)
    for kd in range(3):
        slab = slabs[kd]
        for kh in range(3):
            for kw in range(3):
                tap = jnp.dot(slab, w_ref[kd * 9 + kh * 3 + kw],
                              preferred_element_type=jnp.float32)
                s = (kh - 1) * wp + (kw - 1)          # flat row offset of tap
                acc = acc + _roll_rows(tap, (-s) % hpwp)
    acc = acc + b_ref[...]

    if shortcut_refs is not None:
        xs_ref, scw_ref, scb_ref = shortcut_refs
        # 1x1x1 conv shortcut + residual add, fused (f32 matmul: tiny K).
        sc = jnp.dot(xs_ref[...], scw_ref[...],
                     preferred_element_type=jnp.float32)
        acc = acc + sc + scb_ref[...]

    o_ref[...] = acc


def conv1_kernel(xm, x0, xp, scale, shift, mask, w, b, o, *, wp):
    _fused_conv_body(xm, x0, xp, scale, shift, mask, w, b, o, wp=wp)


def conv2_kernel(xm, x0, xp, scale, shift, mask, w, b, xs, scw, scb, o, *, wp):
    _fused_conv_body(xm, x0, xp, scale, shift, mask, w, b, o, wp=wp,
                     shortcut_refs=(xs, scw, scb))


# ----------------------------------------------------------------------------
# Pallas wrappers
# ----------------------------------------------------------------------------
def group_norm_scale_shift(x_flat, hw_mask, true_count, gamma, beta, groups, eps):
    """x_flat: (N, Dx, HpWp, C) f32, padded-HW layout (ring masked out).
    Returns per-sample per-channel (scale, shift), each (N, 1, C) f32."""
    n, dx, hpwp, c = x_flat.shape
    sums, sqs = pl.pallas_call(
        gn_stats_kernel,
        out_shape=(jax.ShapeDtypeStruct((n, 1, c), jnp.float32),
                   jax.ShapeDtypeStruct((n, 1, c), jnp.float32)),
        grid=(n, dx),
        in_specs=[
            pl.BlockSpec((None, None, hpwp, c), lambda nn, dd: (nn, dd, 0, 0)),
            pl.BlockSpec((hpwp, 1), lambda nn, dd: (0, 0)),
        ],
        out_specs=(pl.BlockSpec((1, 1, c), lambda nn, dd: (nn, 0, 0)),
                   pl.BlockSpec((1, 1, c), lambda nn, dd: (nn, 0, 0))),
        compiler_params=pltpu.CompilerParams(
            dimension_semantics=("parallel", "arbitrary")),
    )(x_flat, hw_mask)

    # Tiny O(N*C) finalization in plain JAX (per-group stats -> affine).
    cg = c // groups
    cnt = float(true_count * cg)
    gsum = sums.reshape(n, groups, cg).sum(-1)
    gsq = sqs.reshape(n, groups, cg).sum(-1)
    mean = gsum / cnt
    var = jnp.maximum(gsq / cnt - mean * mean, 0.0)
    rstd = jax.lax.rsqrt(var + eps)
    mean_c = jnp.repeat(mean, cg, axis=-1)                 # (N, C)
    rstd_c = jnp.repeat(rstd, cg, axis=-1)                 # (N, C)
    scale = rstd_c * gamma.astype(jnp.float32)[None, :]
    shift = beta.astype(jnp.float32)[None, :] - mean_c * scale
    return scale.reshape(n, 1, c), shift.reshape(n, 1, c)


def fused_norm_silu_conv3d(xpad_flat, scale, shift, hw_mask, w, b, *, wp,
                           shortcut=None, compute_dtype=jnp.bfloat16):
    """xpad_flat: (N, D+2, HpWp, C) raw (pre-norm) input, zero/stale ring masked
    in-kernel.  Returns (N, D, HpWp, Cout) f32 in the padded-HW layout."""
    n, dp, hpwp, c = xpad_flat.shape
    d = dp - 2
    cout = w.shape[-1]
    w27 = w.reshape(27, c, cout).astype(compute_dtype)
    b2 = b.reshape(1, cout).astype(jnp.float32)

    def x_spec(k):
        return pl.BlockSpec((None, None, hpwp, c),
                            lambda nn, dd, k=k: (nn, dd + k, 0, 0))

    in_specs = [
        x_spec(0), x_spec(1), x_spec(2),
        pl.BlockSpec((1, 1, c), lambda nn, dd: (nn, 0, 0)),
        pl.BlockSpec((1, 1, c), lambda nn, dd: (nn, 0, 0)),
        pl.BlockSpec((hpwp, 1), lambda nn, dd: (0, 0)),
        pl.BlockSpec((27, c, cout), lambda nn, dd: (0, 0, 0)),
        pl.BlockSpec((1, cout), lambda nn, dd: (0, 0)),
    ]
    args = [xpad_flat, xpad_flat, xpad_flat, scale, shift, hw_mask, w27, b2]

    if shortcut is None:
        kernel = partial(conv1_kernel, wp=wp)
    else:
        xsc_flat, sc_w, sc_b = shortcut
        cin = xsc_flat.shape[-1]
        in_specs += [
            pl.BlockSpec((None, None, hpwp, cin),
                         lambda nn, dd: (nn, dd + 1, 0, 0)),
            pl.BlockSpec((cin, cout), lambda nn, dd: (0, 0)),
            pl.BlockSpec((1, cout), lambda nn, dd: (0, 0)),
        ]
        args += [xsc_flat, sc_w.astype(jnp.float32),
                 sc_b.reshape(1, cout).astype(jnp.float32)]
        kernel = partial(conv2_kernel, wp=wp)

    return pl.pallas_call(
        kernel,
        out_shape=jax.ShapeDtypeStruct((n, d, hpwp, cout), jnp.float32),
        grid=(n, d),
        in_specs=in_specs,
        out_specs=pl.BlockSpec((None, None, hpwp, cout),
                               lambda nn, dd: (nn, dd, 0, 0)),
        compiler_params=pltpu.CompilerParams(
            dimension_semantics=("parallel", "parallel")),
    )(*args)


# ----------------------------------------------------------------------------
# Glue: channels-last padded/flattened layout
# ----------------------------------------------------------------------------
def _pad_flatten(x_ndhwc):
    """Zero-pad D,H,W by 1 and flatten H,W: (N,D,H,W,C) -> (N,D+2,(H+2)*(W+2),C)."""
    n, d, h, w, c = x_ndhwc.shape
    xp = jnp.pad(x_ndhwc, ((0, 0), (1, 1), (1, 1), (1, 1), (0, 0)))
    return xp.reshape(n, d + 2, (h + 2) * (w + 2), c)


# ----------------------------------------------------------------------------
# Full ResnetBlock3D forward (Pallas-backed)
# ----------------------------------------------------------------------------
def resnet_block_3d(x_ncdhw, params, groups, eps=1e-6,
                    compute_dtype=jnp.bfloat16):
    x = jnp.transpose(x_ncdhw, (0, 2, 3, 4, 1)).astype(jnp.float32)  # NDHWC
    n, d, h, w, cin = x.shape
    cout = params["conv1_w"].shape[-1]
    hp, wp = h + 2, w + 2
    hpwp = hp * wp
    true_count = d * h * w

    hw_mask = (jnp.zeros((hp, wp), jnp.float32)
               .at[1:h + 1, 1:w + 1].set(1.0)
               .reshape(hpwp, 1))

    xpad = _pad_flatten(x)                                    # (N, D+2, HpWp, Cin)

    # norm1 stats (Pallas, depth-tiled masked reduction)
    s1, t1 = group_norm_scale_shift(xpad, hw_mask, true_count,
                                    params["norm1_gamma"],
                                    params["norm1_beta"], groups, eps)
    # norm1 + SiLU + conv1 (3x3x3, pad 1), fully fused
    h1p = fused_norm_silu_conv3d(xpad, s1, t1, hw_mask,
                                 params["conv1_w"], params["conv1_b"],
                                 wp=wp, compute_dtype=compute_dtype)
    # norm2 stats over the interior of h1 (the stale HW ring is masked out)
    s2, t2 = group_norm_scale_shift(h1p, hw_mask, true_count,
                                    params["norm2_gamma"],
                                    params["norm2_beta"], groups, eps)
    # Dropout(p=0.0) is an eval-mode identity; no kernel emitted for it.
    h1pp = jnp.pad(h1p, ((0, 0), (1, 1), (0, 0), (0, 0)))     # depth pad only
    # norm2 + SiLU + conv2 (3x3x3) + 1x1x1 shortcut + residual add, fully fused
    outp = fused_norm_silu_conv3d(h1pp, s2, t2, hw_mask,
                                  params["conv2_w"], params["conv2_b"],
                                  wp=wp,
                                  shortcut=(xpad, params["sc_w"], params["sc_b"]),
                                  compute_dtype=compute_dtype)
    # Extract the interior of the padded-HW output layout, back to NCDHW.
    out = outp.reshape(n, d, hp, wp, cout)[:, :, 1:h + 1, 1:w + 1, :]
    return jnp.transpose(out, (0, 4, 1, 2, 3))


# ----------------------------------------------------------------------------
# Pure-JAX reference (for correctness check)
# ----------------------------------------------------------------------------
def resnet_block_3d_ref(x_ncdhw, params, groups, eps=1e-6):
    x = jnp.transpose(x_ncdhw, (0, 2, 3, 4, 1)).astype(jnp.float32)

    def gn(x5, gamma, beta):
        n, d, h, w, c = x5.shape
        cg = c // groups
        xr = x5.reshape(n, d * h * w, groups, cg)
        mean = jnp.mean(xr, axis=(1, 3), keepdims=True)
        var = jnp.mean((xr - mean) ** 2, axis=(1, 3), keepdims=True)
        xn = ((xr - mean) / jnp.sqrt(var + eps)).reshape(n, d, h, w, c)
        return xn * gamma + beta

    def silu(v):
        return v * jax.nn.sigmoid(v)

    def conv(x5, wgt, b):
        y = jax.lax.conv_general_dilated(
            x5, wgt, window_strides=(1, 1, 1), padding="SAME",
            dimension_numbers=("NDHWC", "DHWIO", "NDHWC"),
            precision=jax.lax.Precision.HIGHEST)
        return y + b

    hdn = conv(silu(gn(x, params["norm1_gamma"], params["norm1_beta"])),
               params["conv1_w"], params["conv1_b"])
    hdn = conv(silu(gn(hdn, params["norm2_gamma"], params["norm2_beta"])),
               params["conv2_w"], params["conv2_b"])
    sc = jnp.einsum("ndhwc,co->ndhwo", x, params["sc_w"],
                    precision=jax.lax.Precision.HIGHEST) + params["sc_b"]
    out = sc + hdn
    return jnp.transpose(out, (0, 4, 1, 2, 3))


# ----------------------------------------------------------------------------
# Main
# ----------------------------------------------------------------------------
if __name__ == "__main__":
    # Small shapes consistent with the module: dims=3, in=8, out=16, groups=4.
    N, C_IN, C_OUT, D, H, W = 2, 8, 16, 4, 8, 8
    GROUPS, EPS = 4, 1e-6

    key = jax.random.PRNGKey(0)
    ks = jax.random.split(key, 10)

    def rnd(k, shape, scale):
        return (scale * jax.random.normal(k, shape)).astype(jnp.float32)

    params = {
        "norm1_gamma": 1.0 + rnd(ks[0], (C_IN,), 0.05),
        "norm1_beta": rnd(ks[1], (C_IN,), 0.05),
        "norm2_gamma": 1.0 + rnd(ks[2], (C_OUT,), 0.05),
        "norm2_beta": rnd(ks[3], (C_OUT,), 0.05),
        # Conv3d weights in DHWIO layout (kd, kh, kw, cin, cout)
        "conv1_w": rnd(ks[4], (3, 3, 3, C_IN, C_OUT), 1.0 / (27 * C_IN) ** 0.5),
        "conv1_b": rnd(ks[5], (C_OUT,), 0.02),
        "conv2_w": rnd(ks[6], (3, 3, 3, C_OUT, C_OUT), 1.0 / (27 * C_OUT) ** 0.5),
        "conv2_b": rnd(ks[7], (C_OUT,), 0.02),
        # 1x1x1 conv shortcut (linear over channels)
        "sc_w": rnd(ks[8], (C_IN, C_OUT), 1.0 / C_IN ** 0.5),
        "sc_b": rnd(ks[9], (C_OUT,), 0.02),
    }

    x = jax.random.normal(jax.random.PRNGKey(42), (N, C_IN, D, H, W), jnp.float32)

    out = jax.block_until_ready(resnet_block_3d(x, params, GROUPS, EPS))
    ref = jax.block_until_ready(resnet_block_3d_ref(x, params, GROUPS, EPS))

    assert out.shape == (N, C_OUT, D, H, W), out.shape
    # Tolerances sized for bf16 MXU operands with f32 accumulation through two
    # stacked 3x3x3 convs (structural bugs would show up as O(1) errors).
    max_err = float(jnp.max(jnp.abs(out - ref)))
    rel_rms = float(jnp.sqrt(jnp.mean((out - ref) ** 2))
                    / jnp.sqrt(jnp.mean(ref ** 2)))
    assert max_err < 8e-2 and rel_rms < 2e-2, (max_err, rel_rms)
    print("KERNEL_OK")
</pallas_src>

<mosaic_0001>
module attributes {stable_mosaic.version = 11 : i64} {
  func.func @gn_stats_kernel(%arg0: i32, %arg1: i32, %arg2: memref<1x1x100x8xf32, #tpu.memory_space<vmem>>, %arg3: memref<100x1xf32, #tpu.memory_space<vmem>>, %arg4: memref<1x1x8xf32, #tpu.memory_space<vmem>>, %arg5: memref<1x1x8xf32, #tpu.memory_space<vmem>>) attributes {dimension_semantics = [#tpu.dimension_semantics<parallel>, #tpu.dimension_semantics<arbitrary>], iteration_bounds = array<i64: 2, 6>, scalar_prefetch = 0 : i64, scratch_operands = 0 : i64, tpu.core_type = #tpu.core_type<tc>, window_params = [{transform_indices = @transform_0, window_bounds = array<i64: 1, 1, 100, 8>}, {pipeline_mode = #tpu.pipeline_mode<synchronous>, transform_indices = @transform_1, window_bounds = array<i64: 100, 1>}, {transform_indices = @transform_2, window_bounds = array<i64: 1, 1, 8>}, {transform_indices = @transform_3, window_bounds = array<i64: 1, 1, 8>}]} {
    %c0 = arith.constant 0 : index
    %c0_0 = arith.constant 0 : index
    %c0_1 = arith.constant 0 : index
    %c0_2 = arith.constant 0 : index
    %0 = vector.load %arg2[%c0, %c0_0, %c0_1, %c0_2] : memref<1x1x100x8xf32, #tpu.memory_space<vmem>>, vector<1x1x100x8xf32>
    %1 = vector.shape_cast %0 : vector<1x1x100x8xf32> to vector<100x8xf32>
    %c0_3 = arith.constant 0 : index
    %c0_4 = arith.constant 0 : index
    %2 = vector.load %arg3[%c0_3, %c0_4] : memref<100x1xf32, #tpu.memory_space<vmem>>, vector<100x1xf32>
    %3 = vector.broadcast %2 : vector<100x1xf32> to vector<100x8xf32>
    %4 = arith.mulf %1, %3 : vector<100x8xf32>
    %cst = arith.constant dense<0.000000e+00> : vector<8xf32>
    %5 = vector.multi_reduction <add>, %4, %cst [0] : vector<100x8xf32> to vector<8xf32>
    %6 = vector.shape_cast %5 : vector<8xf32> to vector<1x8xf32>
    %7 = arith.mulf %4, %1 : vector<100x8xf32>
    %cst_5 = arith.constant dense<0.000000e+00> : vector<8xf32>
    %8 = vector.multi_reduction <add>, %7, %cst_5 [0] : vector<100x8xf32> to vector<8xf32>
    %9 = vector.shape_cast %8 : vector<8xf32> to vector<1x8xf32>
    %c0_i32 = arith.constant 0 : i32
    %10 = arith.cmpi eq, %arg1, %c0_i32 : i32
    %11 = arith.extui %10 : i1 to i32
    %c0_i32_6 = arith.constant 0 : i32
    %12 = arith.cmpi ne, %11, %c0_i32_6 : i32
    scf.if %12 {
      %cst_19 = arith.constant 0.000000e+00 : f32
      %21 = vector.broadcast %cst_19 : f32 to vector<1x1x8xf32>
      %c0_20 = arith.constant 0 : index
      %c0_21 = arith.constant 0 : index
      %c0_22 = arith.constant 0 : index
      %22 = vector.load %arg4[%c0_20, %c0_21, %c0_22] : memref<1x1x8xf32, #tpu.memory_space<vmem>>, vector<1x1x8xf32>
      tpu.vector_store %arg4[%c0_20, %c0_21, %c0_22], %21 {strides = array<i32>} : memref<1x1x8xf32, #tpu.memory_space<vmem>>, vector<1x1x8xf32>,
      %cst_23 = arith.constant 0.000000e+00 : f32
      %23 = vector.broadcast %cst_23 : f32 to vector<1x1x8xf32>
      %c0_24 = arith.constant 0 : index
      %c0_25 = arith.constant 0 : index
      %c0_26 = arith.constant 0 : index
      %24 = vector.load %arg5[%c0_24, %c0_25, %c0_26] : memref<1x1x8xf32, #tpu.memory_space<vmem>>, vector<1x1x8xf32>
      tpu.vector_store %arg5[%c0_24, %c0_25, %c0_26], %23 {strides = array<i32>} : memref<1x1x8xf32, #tpu.memory_space<vmem>>, vector<1x1x8xf32>,
    } else {
    }
    %c0_7 = arith.constant 0 : index
    %c0_8 = arith.constant 0 : index
    %c0_9 = arith.constant 0 : index
    %13 = vector.load %arg4[%c0_7, %c0_8, %c0_9] : memref<1x1x8xf32, #tpu.memory_space<vmem>>, vector<1x1x8xf32>
    %14 = vector.shape_cast %6 : vector<1x8xf32> to vector<1x1x8xf32>
    %15 = arith.addf %13, %14 : vector<1x1x8xf32>
    %c0_10 = arith.constant 0 : index
    %c0_11 = arith.constant 0 : index
    %c0_12 = arith.constant 0 : index
    %16 = vector.load %arg4[%c0_10, %c0_11, %c0_12] : memref<1x1x8xf32, #tpu.memory_space<vmem>>, vector<1x1x8xf32>
    tpu.vector_store %arg4[%c0_10, %c0_11, %c0_12], %15 {strides = array<i32>} : memref<1x1x8xf32, #tpu.memory_space<vmem>>, vector<1x1x8xf32>,
    %c0_13 = arith.constant 0 : index
    %c0_14 = arith.constant 0 : index
    %c0_15 = arith.constant 0 : index
    %17 = vector.load %arg5[%c0_13, %c0_14, %c0_15] : memref<1x1x8xf32, #tpu.memory_space<vmem>>, vector<1x1x8xf32>
    %18 = vector.shape_cast %9 : vector<1x8xf32> to vector<1x1x8xf32>
    %19 = arith.addf %17, %18 : vector<1x1x8xf32>
    %c0_16 = arith.constant 0 : index
    %c0_17 = arith.constant 0 : index
    %c0_18 = arith.constant 0 : index
    %20 = vector.load %arg5[%c0_16, %c0_17, %c0_18] : memref<1x1x8xf32, #tpu.memory_space<vmem>>, vector<1x1x8xf32>
    tpu.vector_store %arg5[%c0_16, %c0_17, %c0_18], %19 {strides = array<i32>} : memref<1x1x8xf32, #tpu.memory_space<vmem>>, vector<1x1x8xf32>,
    return
  }
  func.func @transform_0(%arg0: i32, %arg1: i32) -> (i32, i32, i32, i32) {
    %c0_i32 = arith.constant 0 : i32
    %c0_i32_0 = arith.constant 0 : i32
    %c0_i32_1 = arith.constant 0 : i32
    return %arg0, %arg1, %c0_i32, %c0_i32_0 : i32, i32, i32, i32
  }
  func.func @transform_1(%arg0: i32, %arg1: i32) -> (i32, i32) {
    %c0_i32 = arith.constant 0 : i32
    %c0_i32_0 = arith.constant 0 : i32
    %c0_i32_1 = arith.constant 0 : i32
    return %c0_i32, %c0_i32_0 : i32, i32
  }
  func.func @transform_2(%arg0: i32, %arg1: i32) -> (i32, i32, i32) {
    %c0_i32 = arith.constant 0 : i32
    %c0_i32_0 = arith.constant 0 : i32
    %c0_i32_1 = arith.constant 0 : i32
    return %arg0, %c0_i32, %c0_i32_0 : i32, i32, i32
  }
  func.func @transform_3(%arg0: i32, %arg1: i32) -> (i32, i32, i32) {
    %c0_i32 = arith.constant 0 : i32
    %c0_i32_0 = arith.constant 0 : i32
    %c0_i32_1 = arith.constant 0 : i32
    return %arg0, %c0_i32, %c0_i32_0 : i32, i32, i32
  }
}

</mosaic_0001>

<llo_original>
// kernel: tpu_custom_call.1
$region0: #{tpu_custom_call.1}
  #allocation0 [shape = 'u32[]', space=smem, size = 0x4, offset = 0x4, fixed_abs, tag = 'smem constant byte address 0x4 - core index']
  #allocation1 [shape = 'u32[144,128]{1,0:T(1,128)}', space=vmem, size = 0x12000, scoped, tag = 'internal scratch']
  %s0 = inlined_call_operand.vmem [shape: f32[2,6,100,8], index: 0, kind: input, shape index: {}]
  %s1 = inlined_call_operand.vmem [shape: f32[100,1], index: 1, kind: input, shape index: {}]
  %s2 = inlined_call_operand.hbm [shape: f32[2,1,8], index: 2, kind: output, shape index: {0}]
  %s3 = inlined_call_operand.hbm [shape: f32[2,1,8], index: 3, kind: output, shape index: {1}]
  %4 = xla_tuple %s2, %s3
  %s5 = sld [smem:[#allocation0]]
  $region53: #{tpu_custom_call.1} parent=0
    _
  %s7 = ssub.s32 1, %s5
  %s8 = scalar_select 0, %s7, %s5
  $region1: #{tpu_custom_call.1} parent=0
    #allocation2 [shape = 'u8[1024]{0}', space=vmem, size = 0x400, scoped, tag = 'output window, operand 0']
    #allocation3 [shape = 's32[2]{0}', space=sflag, size = 0x8, scoped, tag = 'scoped memory for tpu_custom_call.1']
    #allocation4 [shape = 'u8[1024]{0}', space=vmem, size = 0x400, scoped, tag = 'output window, operand 1']
    #allocation5 [shape = 's32[2]{0}', space=sflag, size = 0x8, scoped, tag = 'scoped memory for tpu_custom_call.1']
    %9 = vsyncpa [#allocation3], 0
    %s10 = scalar_lea.sflag [#allocation3], 1
    %11 = vsyncpa %s10, 0
    %12 = vsyncpa [#allocation5], 0
    %s13 = scalar_lea.sflag [#allocation5], 1
    %14 = vsyncpa %s13, 0
    loop: start=0, step=1, limit=14
    $region2: #{tpu_custom_call.1} parent=1 // loop_pre_header
      _
    $region3: #{tpu_custom_call.1} parent=1 // loop_header
      %s16 = sphi 0, %s20
      %p17 = scmp.ge.s32.totalorder %s16, 14
      %s23 = sphi 0, %s35
      %s24 = sphi 0, %s31
      %s25 = sphi 0, %s23
      %s26 = sphi 0, %s24
      %s27 = sphi 0, %s25
      %s28 = sphi 0, %s26
      %s40 = sphi 0, %s42
      %s43 = sphi 0, %s40
      %s44 = sphi 0, %s43
      %s60 = sphi 0, %s44
      %s64 = sphi 0, %s64
      %s66 = sphi 0, %s64
      %s67 = sphi 0, %s66
      %s81 = sphi 0, %s67
      %s87 = sphi 0, %s89
      %s90 = sphi 0, %s87
      %s91 = sphi 0, %s90
      %s107 = sphi 0, %s91
      %s113 = sphi 0, %s115
      %s116 = sphi 0, %s113
      %s117 = sphi 0, %s116
      %s133 = sphi 0, %s117
    $region4: #{tpu_custom_call.1} parent=1 // loop_header_branch
      %19 = sbr.rel (%p17) target = $region8
    $region5: #{tpu_custom_call.1} parent=1 // loop_body
      %s21 = ssub.s32 %s16, 1
      %s22 = ssub.s32 %s16, 2
      %s29 = sadd.s32 1, %s24
      %p30 = scmp.ge.s32.totalorder %s29, 6
      %s31 = scalar_select %p30, 0, %s29
      %s32 = sadd.s32 1, %s23
      %s33 = scalar_select %p30, %s32, %s23
      %p34 = scmp.ge.s32.totalorder %s33, 2
      %s35 = scalar_select %p34, 0, %s33
      %s36 = ssub.s32 %s23, %s35
      %s37 = ssub.s32 %s24, %s31
      %s38 = sor.u32 %s36, %s37
      %p39 = scmp.eq.s32.totalorder %s38, 0
      %s41 = sadd.s32 %s40, 1
      %s42 = scalar_select %p39, %s40, %s41
      %p45 = pneg %p39
      %p46 = scmp.eq.s32.totalorder %s16, 11
      %p47 = por %p45, %p46
      %p48 = scmp.ne.s32.totalorder %s40, %s43
      %p49 = scmp.eq.s32.totalorder %s16, 0
      %p50 = por %p48, %p49
      %p51 = scmp.ne.s32.totalorder %s40, %s43
      %p52 = scmp.eq.s32.totalorder %s21, 11
      %p53 = por %p51, %p52
      %p54 = scmp.ne.s32.totalorder %s43, %s44
      %p55 = scmp.eq.s32.totalorder %s21, 0
      %p56 = por %p54, %p55
      %p57 = scmp.ne.s32.totalorder %s43, %s44
      %p58 = scmp.eq.s32.totalorder %s22, 11
      %p59 = por %p57, %p58
      %p61 = scmp.ne.s32.totalorder %s44, %s60
      %p62 = scmp.eq.s32.totalorder %s22, 0
      %p63 = por %p61, %p62
      %s65 = sadd.s32 %s64, 1
      %p68 = scmp.eq.s32.totalorder %s16, 11
      %p69 = scmp.ne.s32.totalorder %s64, %s66
      %p70 = scmp.eq.s32.totalorder %s16, 0
      %p71 = por %p69, %p70
      %p72 = scmp.ne.s32.totalorder %s64, %s66
      %p73 = scmp.eq.s32.totalorder %s21, 11
      %p74 = por %p72, %p73
      %p75 = scmp.ne.s32.totalorder %s66, %s67
      %p76 = scmp.eq.s32.totalorder %s21, 0
      %p77 = por %p75, %p76
      %p78 = scmp.ne.s32.totalorder %s66, %s67
      %p79 = scmp.eq.s32.totalorder %s22, 11
      %p80 = por %p78, %p79
      %p82 = scmp.ne.s32.totalorder %s67, %s81
      %p83 = scmp.eq.s32.totalorder %s22, 0
      %p84 = por %p82, %p83
      %s85 = ssub.s32 %s23, %s35
      %p86 = scmp.eq.s32.totalorder %s85, 0
      %s88 = sadd.s32 %s87, 1
      %s89 = scalar_select %p86, %s87, %s88
      %p92 = pneg %p86
      %p93 = scmp.eq.s32.totalorder %s16, 11
      %p94 = por %p92, %p93
      %p95 = scmp.ne.s32.totalorder %s87, %s90
      %p96 = scmp.eq.s32.totalorder %s16, 0
      %p97 = por %p95, %p96
      %p98 = scmp.ne.s32.totalorder %s87, %s90
      %p99 = scmp.eq.s32.totalorder %s21, 11
      %p100 = por %p98, %p99
      %p101 = scmp.ne.s32.totalorder %s90, %s91
      %p102 = scmp.eq.s32.totalorder %s21, 0
      %p103 = por %p101, %p102
      %p104 = scmp.ne.s32.totalorder %s90, %s91
      %p105 = scmp.eq.s32.totalorder %s22, 11
      %p106 = por %p104, %p105
      %p108 = scmp.ne.s32.totalorder %s91, %s107
      %p109 = scmp.eq.s32.totalorder %s22, 0
      %p110 = por %p108, %p109
      %s111 = ssub.s32 %s23, %s35
      %p112 = scmp.eq.s32.totalorder %s111, 0
      %s114 = sadd.s32 %s113, 1
      %s115 = scalar_select %p112, %s113, %s114
      %p118 = pneg %p112
      %p119 = scmp.eq.s32.totalorder %s16, 11
      %p120 = por %p118, %p119
      %p121 = scmp.ne.s32.totalorder %s113, %s116
      %p122 = scmp.eq.s32.totalorder %s16, 0
      %p123 = por %p121, %p122
      %p124 = scmp.ne.s32.totalorder %s113, %s116
      %p125 = scmp.eq.s32.totalorder %s21, 11
      %p126 = por %p124, %p125
      %p127 = scmp.ne.s32.totalorder %s116, %s117
      %p128 = scmp.eq.s32.totalorder %s21, 0
      %p129 = por %p127, %p128
      %p130 = scmp.ne.s32.totalorder %s116, %s117
      %p131 = scmp.eq.s32.totalorder %s22, 11
      %p132 = por %p130, %p131
      %p134 = scmp.ne.s32.totalorder %s117, %s133
      %p135 = scmp.eq.s32.totalorder %s22, 0
      %p136 = por %p134, %p135
      %p137 = scmp.le.s32.totalorder 1, %s16
      %p138 = scmp.lt.s32.totalorder %s16, 13
      %p139 = pnand %p137, %p138
      %p140 = pneg %p139
      // Predicated region
      $region9: #{tpu_custom_call.1} parent=5 // pred_check
        _
      $region10: #{tpu_custom_call.1} parent=5 // pred_check_branch
        %142 = sbr.rel (%p139) target = $region12
      $region11: #{tpu_custom_call.1} parent=5 // pred_region
        %s143 = ssub.s32 %s16, 1
        // Predicated region
        $region13: #{tpu_custom_call.1} parent=11 // pred_check
          %p144 = pneg %p77
        $region14: #{tpu_custom_call.1} parent=11 // pred_check_branch
          %146 = sbr.rel (%p144) target = $region16
        $region15: #{tpu_custom_call.1} parent=11 // pred_region
          _
        $region16: #{tpu_custom_call.1} parent=11 // pred_fallthru
          _
      $region12: #{tpu_custom_call.1} parent=5 // pred_fallthru
        _
      %p147 = scmp.lt.s32.totalorder %s16, 12
      // Predicated region
      $region17: #{tpu_custom_call.1} parent=5 // pred_check
        %p148 = pneg %p147
      $region18: #{tpu_custom_call.1} parent=5 // pred_check_branch
        %150 = sbr.rel (%p148) target = $region20
      $region19: #{tpu_custom_call.1} parent=5 // pred_region
        // Predicated region
        $region21: #{tpu_custom_call.1} parent=19 // pred_check
          %p151 = pneg %p50
        $region22: #{tpu_custom_call.1} parent=19 // pred_check_branch
          %153 = sbr.rel (%p151) target = $region24
        $region23: #{tpu_custom_call.1} parent=19 // pred_region
          %p154 = scmp.lt.s32.totalorder %s23, 1
          %s155 = scalar_select %p154, %s23, 1
          %p156 = scmp.lt.s32.totalorder %s24, 5
          %s157 = scalar_select %p156, %s24, 5
          %s158 = smul.addr %s157, 13
          %s159 = smul.addr %s155, 78
          %s160 = sadd.s32 %s158, %s159
          %s161 = smul.addr %s160, 8
          %s162 = scalar_lea.vmem %s0, %s161
        $region24: #{tpu_custom_call.1} parent=19 // pred_fallthru
          _
      $region20: #{tpu_custom_call.1} parent=5 // pred_fallthru
        _
      %p163 = scmp.le.s32.totalorder 1, %s16
      %p164 = scmp.lt.s32.totalorder %s16, 13
      %p165 = pnand %p163, %p164
      %p166 = pneg %p165
      // Predicated region
      $region25: #{tpu_custom_call.1} parent=5 // pred_check
        _
      $region26: #{tpu_custom_call.1} parent=5 // pred_check_branch
        %168 = sbr.rel (%p165) target = $region28
      $region27: #{tpu_custom_call.1} parent=5 // pred_region
        %s169 = ssub.s32 %s16, 1
        %p170 = scmp.lt.s32.totalorder %s25, 1
        %s171 = scalar_select %p170, %s25, 1
        %p172 = scmp.lt.s32.totalorder %s26, 5
        %s173 = scalar_select %p172, %s26, 5
        %s174 = smul.addr %s173, 13
        %s175 = smul.addr %s171, 78
        %s176 = sadd.s32 %s174, %s175
        %s177 = smul.addr %s176, 8
        %s178 = scalar_lea.vmem %s0, %s177
        %p179 = pneg %p56
        %p180 = pneg %p53
        %p181 = pneg %p77
        %p182 = pneg %p74
        %p183 = pneg %p103
        %p184 = pneg %p100
        %s185 = sand.u32 %s90, 1
        %s186 = scalar_lea.sflag [#allocation3], %s185
        %s187 = sand.u32 %s90, 1
        %s188 = scalar_lea.vmem [#allocation2], %s187
        %p189 = pneg %p129
        %p190 = pneg %p126
        %s191 = sand.u32 %s116, 1
        %s192 = scalar_lea.sflag [#allocation5], %s191
        %s193 = sand.u32 %s116, 1
        %s194 = scalar_lea.vmem [#allocation4], %s193
        %p195 = scmp.lt.s32.totalorder %s25, 1
        %s196 = scalar_select %p195, %s25, 1
        %p197 = scmp.lt.s32.totalorder %s26, 5
        %s198 = scalar_select %p197, %s26, 5
        %s199 = smul.addr %s198, 13
        %s200 = smul.addr %s196, 78
        %s201 = sadd.s32 %s199, %s200
        %s202 = smul.addr %s201, 8
        %s203 = scalar_lea.vmem %s0, %s202
        %v204 = vld [vmem:[%s203] sm:$0xff]
        %v205 = vld [vmem:[%s203 + $0x8] sm:$0xff]
        %v206 = vld [vmem:[%s203 + $0x10] sm:$0xff]
        %v207 = vld [vmem:[%s203 + $0x18] sm:$0xff]
        %v208 = vld [vmem:[%s203 + $0x20] sm:$0xff]
        %v209 = vld [vmem:[%s203 + $0x28] sm:$0xff]
        %v210 = vld [vmem:[%s203 + $0x30] sm:$0xff]
        %v211 = vld [vmem:[%s203 + $0x38] sm:$0xff]
        %v212 = vld [vmem:[%s203 + $0x40] sm:$0xff]
        %v213 = vld [vmem:[%s203 + $0x48] sm:$0xff]
        %v214 = vld [vmem:[%s203 + $0x50] sm:$0xff]
        %v215 = vld [vmem:[%s203 + $0x58] sm:$0xff]
        %v216 = vld [vmem:[%s203 + $0x60] sm:$0xf]
        %v217 = vld [vmem:[%s1] sm:$0xff]
        %v218 = vld [vmem:[%s1 + $0x8] sm:$0xff]
        %v219 = vld [vmem:[%s1 + $0x10] sm:$0xff]
        %v220 = vld [vmem:[%s1 + $0x18] sm:$0xff]
        %v221 = vld [vmem:[%s1 + $0x20] sm:$0xff]
        %v222 = vld [vmem:[%s1 + $0x28] sm:$0xff]
        %v223 = vld [vmem:[%s1 + $0x30] sm:$0xff]
        %v224 = vld [vmem:[%s1 + $0x38] sm:$0xff]
        %v225 = vld [vmem:[%s1 + $0x40] sm:$0xff]
        %v226 = vld [vmem:[%s1 + $0x48] sm:$0xff]
        %v227 = vld [vmem:[%s1 + $0x50] sm:$0xff]
        %v228 = vld [vmem:[%s1 + $0x58] sm:$0xff]
        %v229 = vld [vmem:[%s1 + $0x60] sm:$0xf]
        %231 = vset.pattern.permute.xlu0 0
        %232 = vperm.xlu0 %231, %v217
        %v233 = vpop.permute.xlu0 %232
        %236 = vset.pattern.permute.xlu0 0
        %237 = vperm.xlu0 %236, %v218
        %v238 = vpop.permute.xlu0 %237
        %241 = vset.pattern.permute.xlu0 0
        %242 = vperm.xlu0 %241, %v219
        %v243 = vpop.permute.xlu0 %242
        %246 = vset.pattern.permute.xlu0 0
        %247 = vperm.xlu0 %246, %v220
        %v248 = vpop.permute.xlu0 %247
        %251 = vset.pattern.permute.xlu0 0
        %252 = vperm.xlu0 %251, %v221
        %v253 = vpop.permute.xlu0 %252
        %256 = vset.pattern.permute.xlu0 0
        %257 = vperm.xlu0 %256, %v222
        %v258 = vpop.permute.xlu0 %257
        %261 = vset.pattern.permute.xlu0 0
        %262 = vperm.xlu0 %261, %v223
        %v263 = vpop.permute.xlu0 %262
        %266 = vset.pattern.permute.xlu0 0
        %267 = vperm.xlu0 %266, %v224
        %v268 = vpop.permute.xlu0 %267
        %271 = vset.pattern.permute.xlu0 0
        %272 = vperm.xlu0 %271, %v225
        %v273 = vpop.permute.xlu0 %272
        %276 = vset.pattern.permute.xlu0 0
        %277 = vperm.xlu0 %276, %v226
        %v278 = vpop.permute.xlu0 %277
        %281 = vset.pattern.permute.xlu0 0
        %282 = vperm.xlu0 %281, %v227
        %v283 = vpop.permute.xlu0 %282
        %286 = vset.pattern.permute.xlu0 0
        %287 = vperm.xlu0 %286, %v228
        %v288 = vpop.permute.xlu0 %287
        %291 = vset.pattern.permute.xlu0 0
        %292 = vperm.xlu0 %291, %v229
        %v293 = vpop.permute.xlu0 %292
        %v295 = vmul.f32 %v204, %v233
        %v296 = vmul.f32 %v205, %v238
        %v297 = vmul.f32 %v206, %v243
        %v298 = vmul.f32 %v207, %v248
        %v299 = vmul.f32 %v208, %v253
        %v300 = vmul.f32 %v209, %v258
        %v301 = vmul.f32 %v210, %v263
        %v302 = vmul.f32 %v211, %v268
        %v303 = vmul.f32 %v212, %v273
        %v304 = vmul.f32 %v213, %v278
        %v305 = vmul.f32 %v214, %v283
        %v306 = vmul.f32 %v215, %v288
        %v307 = vmul.f32 %v216, %v293
        %vm308 = vcmask 64512
        %v309 = vsel %vm308, %v295, 0.0
        %v310 = vsel %vm308, %v296, 0.0
        %v311 = vadd.f32 %v309, %v310
        %v312 = vsel %vm308, %v297, 0.0
        %v313 = vadd.f32 %v311, %v312
        %v314 = vsel %vm308, %v298, 0.0
        %v315 = vadd.f32 %v313, %v314
        %v316 = vsel %vm308, %v299, 0.0
        %v317 = vadd.f32 %v315, %v316
        %v318 = vsel %vm308, %v300, 0.0
        %v319 = vadd.f32 %v317, %v318
        %v320 = vsel %vm308, %v301, 0.0
        %v321 = vadd.f32 %v319, %v320
        %v322 = vsel %vm308, %v302, 0.0
        %v323 = vadd.f32 %v321, %v322
        %v324 = vsel %vm308, %v303, 0.0
        %v325 = vadd.f32 %v323, %v324
        %v326 = vsel %vm308, %v304, 0.0
        %v327 = vadd.f32 %v325, %v326
        %v328 = vsel %vm308, %v305, 0.0
        %v329 = vadd.f32 %v327, %v328
        %v330 = vsel %vm308, %v306, 0.0
        %v331 = vadd.f32 %v329, %v330
        %vm332 = vcmask 60416
        %v333 = vsel %vm332, %v307, 0.0
        %v334 = vadd.f32 %v331, %v333
        %v335 = vrot.slane %v334, 4
        %v336 = vadd.f32 %v334, %v335
        %v337 = vrot.slane %v336, 2
        %v338 = vadd.f32 %v336, %v337
        %v339 = vrot.slane %v338, 1
        %v340 = vadd.f32 %v338, %v339
        %v341 = vmul.f32 %v295, %v204
        %v342 = vmul.f32 %v296, %v205
        %v343 = vmul.f32 %v297, %v206
        %v344 = vmul.f32 %v298, %v207
        %v345 = vmul.f32 %v299, %v208
        %v346 = vmul.f32 %v300, %v209
        %v347 = vmul.f32 %v301, %v210
        %v348 = vmul.f32 %v302, %v211
        %v349 = vmul.f32 %v303, %v212
        %v350 = vmul.f32 %v304, %v213
        %v351 = vmul.f32 %v305, %v214
        %v352 = vmul.f32 %v306, %v215
        %v353 = vmul.f32 %v307, %v216
        %v354 = vsel %vm308, %v341, 0.0
        %v355 = vsel %vm308, %v342, 0.0
        %v356 = vadd.f32 %v354, %v355
        %v357 = vsel %vm308, %v343, 0.0
        %v358 = vadd.f32 %v356, %v357
        %v359 = vsel %vm308, %v344, 0.0
        %v360 = vadd.f32 %v358, %v359
        %v361 = vsel %vm308, %v345, 0.0
        %v362 = vadd.f32 %v360, %v361
        %v363 = vsel %vm308, %v346, 0.0
        %v364 = vadd.f32 %v362, %v363
        %v365 = vsel %vm308, %v347, 0.0
        %v366 = vadd.f32 %v364, %v365
        %v367 = vsel %vm308, %v348, 0.0
        %v368 = vadd.f32 %v366, %v367
        %v369 = vsel %vm308, %v349, 0.0
        %v370 = vadd.f32 %v368, %v369
        %v371 = vsel %vm308, %v350, 0.0
        %v372 = vadd.f32 %v370, %v371
        %v373 = vsel %vm308, %v351, 0.0
        %v374 = vadd.f32 %v372, %v373
        %v375 = vsel %vm308, %v352, 0.0
        %v376 = vadd.f32 %v374, %v375
        %v377 = vsel %vm332, %v353, 0.0
        %v378 = vadd.f32 %v376, %v377
        %v379 = vrot.slane %v378, 4
        %v380 = vadd.f32 %v378, %v379
        %v381 = vrot.slane %v380, 2
        %v382 = vadd.f32 %v380, %v381
        %v383 = vrot.slane %v382, 1
        %v384 = vadd.f32 %v382, %v383
        %p385 = scmp.eq.s32.totalorder %s26, 0
        // Predicated region
        $region29: #{tpu_custom_call.1} parent=27 // pred_check
          %p386 = pneg %p385
        $region30: #{tpu_custom_call.1} parent=27 // pred_check_branch
          %388 = sbr.rel (%p386) target = $region32
        $region31: #{tpu_custom_call.1} parent=27 // pred_region
          %vm389 = vcmask 57344
          %390 = vst.msk [vmem:[%s188] sm:$0x1] %vm389, 0.0
          %391 = vst.msk [vmem:[%s194] sm:$0x1] %vm389, 0.0
        $region32: #{tpu_custom_call.1} parent=27 // pred_fallthru
          _
        %v392 = vld [vmem:[%s188] sm:$0x1]
        %v393 = vadd.f32 %v392, %v340
        %vm394 = vcmask 57344
        %395 = vst.msk [vmem:[%s188] sm:$0x1] %vm394, %v393
        %v396 = vld [vmem:[%s194] sm:$0x1]
        %v397 = vadd.f32 %v396, %v384
        %398 = vst.msk [vmem:[%s194] sm:$0x1] %vm394, %v397
        %s399 = sand.u32 %s90, 1
        %s400 = scalar_lea.sflag [#allocation3], %s399
        %s401 = sand.u32 %s90, 1
        %s402 = scalar_lea.vmem [#allocation2], %s401
        %s403 = sand.u32 %s116, 1
        %s404 = scalar_lea.sflag [#allocation5], %s403
        %s405 = sand.u32 %s116, 1
        %s406 = scalar_lea.vmem [#allocation4], %s405
        // Predicated region
        $region33: #{tpu_custom_call.1} parent=27 // pred_check
          %p407 = pneg %p100
        $region34: #{tpu_custom_call.1} parent=27 // pred_check_branch
          %409 = sbr.rel (%p407) target = $region36
        $region35: #{tpu_custom_call.1} parent=27 // pred_region
          %s411 = ssub.s32 16, 16
          %412 = vsyncadd %s400, %s411
          %s413 = smul.addr %s25, 16
          %s414 = scalar_lea.hbm %s2, %s413
          %s416 = sshll.u32 %s402, 4
          %s417 = int_to_ptr.vmem [resolvable:$true] %s416
          %419 = dma.vmem_to_hbm [thread:$0]  %s417, 16, %s414, %s400
        $region36: #{tpu_custom_call.1} parent=27 // pred_fallthru
          _
        // Predicated region
        $region37: #{tpu_custom_call.1} parent=27 // pred_check
          %p420 = pneg %p126
        $region38: #{tpu_custom_call.1} parent=27 // pred_check_branch
          %422 = sbr.rel (%p420) target = $region40
        $region39: #{tpu_custom_call.1} parent=27 // pred_region
          %s424 = ssub.s32 16, 16
          %425 = vsyncadd %s404, %s424
          %s426 = smul.addr %s25, 16
          %s427 = scalar_lea.hbm %s3, %s426
          %s429 = sshll.u32 %s406, 4
          %s430 = int_to_ptr.vmem [resolvable:$true] %s429
          %432 = dma.vmem_to_hbm [thread:$0]  %s430, 16, %s427, %s404
        $region40: #{tpu_custom_call.1} parent=27 // pred_fallthru
          _
      $region28: #{tpu_custom_call.1} parent=5 // pred_fallthru
        _
      %p433 = scmp.le.s32.totalorder 2, %s16
      // Predicated region
      $region41: #{tpu_custom_call.1} parent=5 // pred_check
        %p434 = pneg %p433
      $region42: #{tpu_custom_call.1} parent=5 // pred_check_branch
        %436 = sbr.rel (%p434) target = $region44
      $region43: #{tpu_custom_call.1} parent=5 // pred_region
        %s437 = ssub.s32 %s16, 2
        // Predicated region
        $region45: #{tpu_custom_call.1} parent=43 // pred_check
          %p438 = pneg %p106
        $region46: #{tpu_custom_call.1} parent=43 // pred_check_branch
          %440 = sbr.rel (%p438) target = $region48
        $region47: #{tpu_custom_call.1} parent=43 // pred_region
          %s441 = sand.u32 %s91, 1
          %s442 = scalar_lea.sflag [#allocation3], %s441
          %s443 = sand.u32 %s91, 1
          %s444 = scalar_lea.vmem [#allocation2], %s443
          %445 = dma.done %s442, 16
        $region48: #{tpu_custom_call.1} parent=43 // pred_fallthru
          _
        // Predicated region
        $region49: #{tpu_custom_call.1} parent=43 // pred_check
          %p446 = pneg %p132
        $region50: #{tpu_custom_call.1} parent=43 // pred_check_branch
          %448 = sbr.rel (%p446) target = $region52
        $region51: #{tpu_custom_call.1} parent=43 // pred_region
          %s449 = sand.u32 %s117, 1
          %s450 = scalar_lea.sflag [#allocation5], %s449
          %s451 = sand.u32 %s117, 1
          %s452 = scalar_lea.vmem [#allocation4], %s451
          %453 = dma.done %s450, 16
        $region52: #{tpu_custom_call.1} parent=43 // pred_fallthru
          _
      $region44: #{tpu_custom_call.1} parent=5 // pred_fallthru
        _
    $region6: #{tpu_custom_call.1} parent=1 // loop_footer
      %s20 = sadd.s32 1, %s16
    $region7: #{tpu_custom_call.1} parent=1 // loop_footer_branch
      %15 = sbr.rel target = $region3
    $region8: #{tpu_custom_call.1} parent=1 // loop_exit
      _
    %454 = vsyncpa [#allocation3], 1
    %s455 = scalar_lea.sflag [#allocation3], 1
    %456 = vsyncpa %s455, 1
    %457 = vsyncpa [#allocation5], 1
    %s458 = scalar_lea.sflag [#allocation5], 1
    %459 = vsyncpa %s458, 1

</llo_original>
